<compile_context>
chip_gen: v7x
topology: tpu7x:2x2x1
jax: 0.10.0
libtpu: 0.0.40
codegen_flags: <defaults>
</compile_context>

<pallas_src>
import jax
import jax.numpy as jnp
from jax.experimental import pallas as pl
from jax.experimental.pallas import tpu as pltpu


def vit_input_kernel(x_ref, w_ref, plane_ref, o_ref):
    """out = x @ Wox + plane  (one MXU GEMM, f32 accumulation)."""
    o_ref[...] = (
        jnp.dot(x_ref[...], w_ref[...], preferred_element_type=jnp.float32)
        + plane_ref[...]
    ).astype(o_ref.dtype)


def _largest_aligned_divisor(n, cap):
    """Largest divisor of n that is a multiple of 8 and <= cap (0 if none)."""
    d = (min(cap, n) // 8) * 8
    while d >= 8:
        if n % d == 0:
            return d
        d -= 8
    return 0


def vit_input(x, z, w_embed, b_embed, w_out, b_out, *, embed_features, features):
    """x: (B, S, Fin); z: (S, 2); w_embed: (E, 2); b_embed: (E,);
    w_out: (F, E + Fin); b_out: (F,).  Returns (B, S, F)."""
    B, S, Fin = x.shape
    E, F = embed_features, features
    out_dtype = x.dtype
    xb = x.dtype.itemsize
    f32 = jnp.float32

    # ---- Hoisted batch-invariant Fourier plane (tiny, computed once per call).
    embed = jnp.sin(z.astype(f32) @ w_embed.astype(f32).T + b_embed.astype(f32))  # (S, E)
    plane = embed @ w_out[:, :E].astype(f32).T + b_out.astype(f32)                # (S, F) f32
    # concat([embed, x]) @ W^T splits into the plane above + x @ Wox below.
    wox = w_out[:, E:].T.astype(x.dtype)                                          # (Fin, F)

    # ---- Tile selection from the double-buffered VMEM footprint.
    BUDGET = 32 * 1024 * 1024          # working-set target (safe on v7x 64 MiB VMEM)
    W_BUDGET = 12 * 1024 * 1024        # max double-buffered weight-tile bytes

    if F % 128 != 0 or 2 * Fin * F * xb <= W_BUDGET:
        tF = F                          # single F tile: Wox fetched once, no padding
    else:
        tF = 128
        for cand in (1024, 512, 256):
            if F % cand == 0 and 2 * Fin * cand * xb <= W_BUDGET:
                tF = cand
                break
    n_f = F // tF

    # Per-M-row double-buffered bytes (x tile + f32 plane tile + out tile).
    row2 = 2 * (Fin * xb + tF * 4 + tF * xb)
    budget_rows = max(8, (BUDGET - 2 * Fin * tF * xb) // row2)
    max_rows = int(min(2048, budget_rows))

    M = B * S
    mode, tM = None, None
    if M <= max_rows:
        mode, tM = "fold", M                          # whole problem is one M tile
    elif S <= max_rows:
        for cand in range(max_rows // S, 0, -1):      # fold `cand` whole batches/tile
            if B % cand == 0 and (S * cand) % 8 == 0:
                mode, tM = "fold", S * cand
                break
    elif S % 8 == 0:
        t = _largest_aligned_divisor(S, max_rows)     # tile inside one sequence
        if t:
            mode, tM = "intra", t

    # ---- Build grid / specs for the chosen layout.
    if mode is not None:
        # Batch folded into the GEMM M dimension: dense MXU tiles, few grid
        # steps, no pad of x and no output slice (contiguous reshapes only).
        x_in = x.reshape(M, Fin)
        if mode == "fold":
            plane_in = jnp.tile(plane, (tM // S, 1)) if tM != S else plane  # (tM, F)
            q = 1
        else:
            plane_in = plane                                                 # (S, F)
            q = S // tM
        n_m = M // tM
        rows = tM
        x_block, p_block, o_block = (tM, Fin), (tM, tF), (tM, tF)
        out_struct = jax.ShapeDtypeStruct((M, F), out_dtype)
        if n_f > 1:
            # F outermost: Wox/plane block indices constant over the inner M
            # sweep -> exactly one HBM pass over the weights.
            grid = (n_f, n_m)
            ix = lambda f, m: (m, 0)
            iw = lambda f, m: (0, f)
            ip = (lambda f, m: (m % q, f)) if q > 1 else (lambda f, m: (0, f))
            io = lambda f, m: (m, f)
        else:
            # Single F tile: everything but x/out fetched exactly once.  M
            # tiles lead the grid so the v7x megacore split has >= 2 steps.
            grid = (n_m, n_f)
            ix = lambda m, f: (m, 0)
            iw = lambda m, f: (0, f)
            ip = (lambda m, f: (m % q, f)) if q > 1 else (lambda m, f: (0, f))
            io = lambda m, f: (m, f)
        args = (x_in, wox, plane_in)
        post = lambda o: o.reshape(B, S, F)
    else:
        # TODO(synk): no 8-aligned batch folding exists for this (B, S); fall
        # back to one-batch-per-step full-S blocks (still unpadded; Wox/plane
        # block indices stay constant across consecutive steps so they remain
        # VMEM-resident).  Very large S*Fin may exceed the VMEM budget here.
        rows = S
        x_block, p_block, o_block = (None, S, Fin), (S, tF), (None, S, tF)
        out_struct = jax.ShapeDtypeStruct((B, S, F), out_dtype)
        if n_f > 1:
            grid = (n_f, B)
            ix = lambda f, b: (b, 0, 0)
            iw = lambda f, b: (0, f)
            ip = lambda f, b: (0, f)
            io = lambda f, b: (b, 0, f)
        else:
            grid = (B, n_f)
            ix = lambda b, f: (b, 0, 0)
            iw = lambda b, f: (0, f)
            ip = lambda b, f: (0, f)
            io = lambda b, f: (b, 0, f)
        args = (x, wox, plane)
        post = lambda o: o

    # ---- VMEM limit derived from the actual working set (+ f32 accumulator).
    ws = 2 * (rows * Fin * xb + Fin * tF * xb + rows * tF * 4 + rows * tF * xb) \
        + rows * tF * 4
    try:
        phys = int(pltpu.get_tpu_info().vmem_capacity_bytes)
    except Exception:
        phys = 64 * 1024 * 1024                        # conservative (v7x-sized)
    vmem_limit = int(min(0.75 * phys,
                         max(16 * 1024 * 1024, ws + 8 * 1024 * 1024)))

    def _call(weight_single_buffered):
        w_kwargs = {"pipeline_mode": pl.Buffered(1)} if weight_single_buffered else {}
        return pl.pallas_call(
            vit_input_kernel,
            out_shape=out_struct,
            grid=grid,
            in_specs=[
                pl.BlockSpec(x_block, ix),
                pl.BlockSpec((Fin, tF), iw, **w_kwargs),
                pl.BlockSpec(p_block, ip),
            ],
            out_specs=pl.BlockSpec(o_block, io),
            compiler_params=pltpu.CompilerParams(
                dimension_semantics=("parallel", "parallel"),
                vmem_limit_bytes=vmem_limit,
            ),
        )(*args)

    if n_f == 1:
        # Wox block index constant across the whole grid -> single-buffer it
        # (frees VMEM, mainly for v7x).  Retry with default double buffering
        # if this JAX build rejects Buffered(1).
        try:
            return post(_call(True))
        except Exception:
            pass
    return post(_call(False))


def make_coords(height, width):
    """Replicates ViTInput's torch.meshgrid(arange(W), arange(H), indexing='ij')
    buffers + FourierEmbedding normalization/concat: returns (S, 2) = [x_norm, y_norm]
    in the same width-major flatten order as the PyTorch module."""
    xg, yg = jnp.meshgrid(jnp.arange(width, dtype=jnp.float32),
                          jnp.arange(height, dtype=jnp.float32),
                          indexing="ij")
    x_flat = xg.reshape(-1)
    y_flat = yg.reshape(-1)
    x_norm = 2.0 * x_flat / (width - 1) - 1.0   # width/height == 1 is NaN in torch too
    y_norm = 2.0 * y_flat / (height - 1) - 1.0
    return jnp.stack([x_norm, y_norm], axis=-1)  # (S, 2)


def reference(x, z, w_embed, b_embed, w_out, b_out):
    embed = jnp.sin(z @ w_embed.T + b_embed)                             # (S, E)
    embed = jnp.broadcast_to(embed[None], (x.shape[0],) + embed.shape)
    cat = jnp.concatenate([embed, x], axis=2)
    return cat @ w_out.T + b_out


if __name__ == "__main__":
    # ---- Small, module-consistent shapes (single-tile path).
    batch = 2
    height, width = 4, 4
    S = height * width                 # 16
    input_features = 8
    embed_features = 16
    features = 32

    key = jax.random.PRNGKey(0)
    k1, k2, k3, k4, k5 = jax.random.split(key, 5)
    w_embed = jax.random.normal(k1, (embed_features, 2), jnp.float32) * 0.5
    b_embed = jax.random.normal(k2, (embed_features,), jnp.float32) * 0.1
    w_out = jax.random.normal(
        k3, (features, embed_features + input_features), jnp.float32) * 0.1
    b_out = jax.random.normal(k4, (features,), jnp.float32) * 0.1
    x = jax.random.normal(k5, (batch, S, input_features), jnp.float32)
    z = make_coords(height, width)

    out = vit_input(x, z, w_embed, b_embed, w_out, b_out,
                    embed_features=embed_features, features=features)
    out = jax.block_until_ready(out)
    ref = reference(x, z, w_embed, b_embed, w_out, b_out)
    assert out.shape == (batch, S, features)
    assert jnp.allclose(out, ref, atol=1e-5, rtol=1e-5)

    # ---- Extra check exercising the multi-M-tile, batch-folded path.
    B2, H2, W2 = 16, 16, 16
    S2 = H2 * W2
    Fin2, E2, F2 = 16, 32, 256
    kk = jax.random.split(jax.random.PRNGKey(1), 5)
    w_e2 = jax.random.normal(kk[0], (E2, 2), jnp.float32) * 0.5
    b_e2 = jax.random.normal(kk[1], (E2,), jnp.float32) * 0.1
    w_o2 = jax.random.normal(kk[2], (F2, E2 + Fin2), jnp.float32) * 0.1
    b_o2 = jax.random.normal(kk[3], (F2,), jnp.float32) * 0.1
    x2 = jax.random.normal(kk[4], (B2, S2, Fin2), jnp.float32)
    z2 = make_coords(H2, W2)
    out2 = jax.block_until_ready(
        vit_input(x2, z2, w_e2, b_e2, w_o2, b_o2, embed_features=E2, features=F2))
    ref2 = reference(x2, z2, w_e2, b_e2, w_o2, b_o2)
    assert out2.shape == (B2, S2, F2)
    assert jnp.allclose(out2, ref2, atol=1e-3, rtol=1e-3)

    print("KERNEL_OK")
</pallas_src>

<mosaic_0001>
module attributes {stable_mosaic.version = 11 : i64} {
  func.func @vit_input_kernel(%arg0: i32, %arg1: i32, %arg2: memref<32x8xf32, #tpu.memory_space<vmem>>, %arg3: memref<8x32xf32, #tpu.memory_space<vmem>>, %arg4: memref<32x32xf32, #tpu.memory_space<vmem>>, %arg5: memref<32x32xf32, #tpu.memory_space<vmem>>) attributes {dimension_semantics = [#tpu.dimension_semantics<parallel>, #tpu.dimension_semantics<parallel>], iteration_bounds = array<i64: 1, 1>, scalar_prefetch = 0 : i64, scratch_operands = 0 : i64, tpu.core_type = #tpu.core_type<tc>, window_params = [{transform_indices = @transform_0, window_bounds = array<i64: 32, 8>}, {pipeline_mode = #tpu.pipeline_mode<synchronous>, transform_indices = @transform_1, window_bounds = array<i64: 8, 32>}, {transform_indices = @transform_2, window_bounds = array<i64: 32, 32>}, {transform_indices = @transform_3, window_bounds = array<i64: 32, 32>}]} {
    %c0 = arith.constant 0 : index
    %c0_0 = arith.constant 0 : index
    %0 = vector.load %arg2[%c0, %c0_0] : memref<32x8xf32, #tpu.memory_space<vmem>>, vector<32x8xf32>
    %c0_1 = arith.constant 0 : index
    %c0_2 = arith.constant 0 : index
    %1 = vector.load %arg3[%c0_1, %c0_2] : memref<8x32xf32, #tpu.memory_space<vmem>>, vector<8x32xf32>
    %cst = arith.constant dense<0.000000e+00> : vector<32x32xf32>
    %2 = tpu.matmul %0, %1, %cst {dimension_numbers = #tpu.dot_dimension_numbers<[1], [0], [0], [1], [0, 0, 1, 1], [], []>} : vector<32x8xf32>, vector<8x32xf32>, vector<32x32xf32> -> vector<32x32xf32>
    %c0_3 = arith.constant 0 : index
    %c0_4 = arith.constant 0 : index
    %3 = vector.load %arg4[%c0_3, %c0_4] : memref<32x32xf32, #tpu.memory_space<vmem>>, vector<32x32xf32>
    %4 = arith.addf %2, %3 : vector<32x32xf32>
    %c0_5 = arith.constant 0 : index
    %c0_6 = arith.constant 0 : index
    %5 = vector.load %arg5[%c0_5, %c0_6] : memref<32x32xf32, #tpu.memory_space<vmem>>, vector<32x32xf32>
    tpu.vector_store %arg5[%c0_5, %c0_6], %4 {strides = array<i32>} : memref<32x32xf32, #tpu.memory_space<vmem>>, vector<32x32xf32>,
    return
  }
  func.func @transform_0(%arg0: i32, %arg1: i32) -> (i32, i32) {
    %c0_i32 = arith.constant 0 : i32
    %c0_i32_0 = arith.constant 0 : i32
    return %arg0, %c0_i32 : i32, i32
  }
  func.func @transform_1(%arg0: i32, %arg1: i32) -> (i32, i32) {
    %c0_i32 = arith.constant 0 : i32
    %c0_i32_0 = arith.constant 0 : i32
    return %c0_i32, %arg1 : i32, i32
  }
  func.func @transform_2(%arg0: i32, %arg1: i32) -> (i32, i32) {
    %c0_i32 = arith.constant 0 : i32
    %c0_i32_0 = arith.constant 0 : i32
    return %c0_i32, %arg1 : i32, i32
  }
  func.func @transform_3(%arg0: i32, %arg1: i32) -> (i32, i32) {
    %c0_i32 = arith.constant 0 : i32
    return %arg0, %arg1 : i32, i32
  }
}

module attributes {stable_mosaic.version = 11 : i64} {
  func.func @vit_input_kernel(%arg0: i32, %arg1: i32, %arg2: memref<32x8xf32, #tpu.memory_space<vmem>>, %arg3: memref<8x32xf32, #tpu.memory_space<vmem>>, %arg4: memref<32x32xf32, #tpu.memory_space<vmem>>, %arg5: memref<32x32xf32, #tpu.memory_space<vmem>>) attributes {dimension_semantics = [#tpu.dimension_semantics<parallel>, #tpu.dimension_semantics<parallel>], iteration_bounds = array<i64: 1, 1>, scalar_prefetch = 0 : i64, scratch_operands = 0 : i64, tpu.core_type = #tpu.core_type<tc>, window_params = [{transform_indices = @transform_0, window_bounds = array<i64: 32, 8>}, {transform_indices = @transform_1, window_bounds = array<i64: 8, 32>}, {transform_indices = @transform_2, window_bounds = array<i64: 32, 32>}, {transform_indices = @transform_3, window_bounds = array<i64: 32, 32>}]} {
    %c0 = arith.constant 0 : index
    %c0_0 = arith.constant 0 : index
    %0 = vector.load %arg2[%c0, %c0_0] : memref<32x8xf32, #tpu.memory_space<vmem>>, vector<32x8xf32>
    %c0_1 = arith.constant 0 : index
    %c0_2 = arith.constant 0 : index
    %1 = vector.load %arg3[%c0_1, %c0_2] : memref<8x32xf32, #tpu.memory_space<vmem>>, vector<8x32xf32>
    %cst = arith.constant dense<0.000000e+00> : vector<32x32xf32>
    %2 = tpu.matmul %0, %1, %cst {dimension_numbers = #tpu.dot_dimension_numbers<[1], [0], [0], [1], [0, 0, 1, 1], [], []>} : vector<32x8xf32>, vector<8x32xf32>, vector<32x32xf32> -> vector<32x32xf32>
    %c0_3 = arith.constant 0 : index
    %c0_4 = arith.constant 0 : index
    %3 = vector.load %arg4[%c0_3, %c0_4] : memref<32x32xf32, #tpu.memory_space<vmem>>, vector<32x32xf32>
    %4 = arith.addf %2, %3 : vector<32x32xf32>
    %c0_5 = arith.constant 0 : index
    %c0_6 = arith.constant 0 : index
    %5 = vector.load %arg5[%c0_5, %c0_6] : memref<32x32xf32, #tpu.memory_space<vmem>>, vector<32x32xf32>
    tpu.vector_store %arg5[%c0_5, %c0_6], %4 {strides = array<i32>} : memref<32x32xf32, #tpu.memory_space<vmem>>, vector<32x32xf32>,
    return
  }
  func.func @transform_0(%arg0: i32, %arg1: i32) -> (i32, i32) {
    %c0_i32 = arith.constant 0 : i32
    %c0_i32_0 = arith.constant 0 : i32
    return %arg0, %c0_i32 : i32, i32
  }
  func.func @transform_1(%arg0: i32, %arg1: i32) -> (i32, i32) {
    %c0_i32 = arith.constant 0 : i32
    %c0_i32_0 = arith.constant 0 : i32
    return %c0_i32, %arg1 : i32, i32
  }
  func.func @transform_2(%arg0: i32, %arg1: i32) -> (i32, i32) {
    %c0_i32 = arith.constant 0 : i32
    %c0_i32_0 = arith.constant 0 : i32
    return %c0_i32, %arg1 : i32, i32
  }
  func.func @transform_3(%arg0: i32, %arg1: i32) -> (i32, i32) {
    %c0_i32 = arith.constant 0 : i32
    return %arg0, %arg1 : i32, i32
  }
}

</mosaic_0001>

<llo_original>
// kernel: tpu_custom_call.1
$region0: #{tpu_custom_call.1}
  #allocation0 [shape = 'u32[]', space=smem, size = 0x4, offset = 0x4, fixed_abs, tag = 'smem constant byte address 0x4 - core index']
  #allocation1 [shape = 'u32[144,128]{1,0:T(1,128)}', space=vmem, size = 0x12000, scoped, tag = 'internal scratch']
  %s0 = inlined_call_operand.vmem [shape: f32[32,8], index: 0, kind: input, shape index: {}]
  %s1 = inlined_call_operand.vmem [shape: f32[8,32], index: 1, kind: input, shape index: {}]
  %s2 = inlined_call_operand.vmem [shape: f32[32,32], index: 2, kind: input, shape index: {}]
  %s3 = inlined_call_operand.hbm [shape: f32[32,32], index: 3, kind: output, shape index: {}]
  %s4 = sld [smem:[#allocation0]]
  $region22: #{tpu_custom_call.1} parent=0
    _
  %s6 = ssub.s32 1, %s4
  %s7 = scalar_select 0, %s6, %s4
  $region1: #{tpu_custom_call.1} parent=0
    #allocation2 [shape = 'u8[16384]{0}', space=vmem, size = 0x4000, scoped, tag = 'output window, operand 0, single buffered']
    #allocation3 [shape = 's32[1]{0}', space=sflag, size = 0x4, scoped, tag = 'scoped memory for tpu_custom_call.1']
    %8 = vsyncpa [#allocation3], 0
    // Predicated region
    $region2: #{tpu_custom_call.1} parent=1 // pred_check
      _
    $region3: #{tpu_custom_call.1} parent=1 // pred_check_branch
      %10 = sbr.rel (0) target = $region5
    $region4: #{tpu_custom_call.1} parent=1 // pred_region
      _
    $region5: #{tpu_custom_call.1} parent=1 // pred_fallthru
      _
    // Predicated region
    $region6: #{tpu_custom_call.1} parent=1 // pred_check
      _
    $region7: #{tpu_custom_call.1} parent=1 // pred_check_branch
      %12 = sbr.rel (0) target = $region9
    $region8: #{tpu_custom_call.1} parent=1 // pred_region
      _
    $region9: #{tpu_custom_call.1} parent=1 // pred_fallthru
      _
    // Predicated region
    $region10: #{tpu_custom_call.1} parent=1 // pred_check
      _
    $region11: #{tpu_custom_call.1} parent=1 // pred_check_branch
      %14 = sbr.rel (0) target = $region13
    $region12: #{tpu_custom_call.1} parent=1 // pred_region
      _
    $region13: #{tpu_custom_call.1} parent=1 // pred_fallthru
      _
    %v15 = vld [vmem:[%s0] sm:$0xff]
    %v16 = vld [vmem:[%s0 + $0x8] sm:$0xff]
    %v17 = vld [vmem:[%s0 + $0x10] sm:$0xff]
    %v18 = vld [vmem:[%s0 + $0x18] sm:$0xff]
    %v19 = vld [vmem:[%s1] sm:$0xff]
    %v20 = vld [vmem:[%s2] sm:$0xff]
    %v21 = vld [vmem:[%s2 + $0x8] sm:$0xff]
    %v22 = vld [vmem:[%s2 + $0x10] sm:$0xff]
    %v23 = vld [vmem:[%s2 + $0x18] sm:$0xff]
    %vm24 = vcmask 64512
    %v26 = vsel %vm24, %v15, 0
    %v29 = vsel %vm24, %v16, 0
    %v32 = vsel %vm24, %v17, 0
    %v35 = vsel %vm24, %v18, 0
    %37 = vmatprep.subr.mxu0 0.0
    %38 = vmatpush1.msra.mxu0 %v19
    %39 = vmatprep.subr.mxu0 0.0
    %40 = vmatpush1.msra.mxu0 0.0
    %41 = vmatprep.subr.mxu0 0.0
    %42 = vmatpush1.msra.mxu0 0.0
    %43 = vmatprep.subr.mxu0 0.0
    %44 = vmatpush1.msra.mxu0 0.0
    %45 = vmatprep.subr.mxu0 0.0
    %46 = vmatpush1.msra.mxu0 0.0
    %47 = vmatprep.subr.mxu0 0.0
    %48 = vmatpush1.msra.mxu0 0.0
    %49 = vmatprep.subr.mxu0 0.0
    %50 = vmatpush1.msra.mxu0 0.0
    %51 = vmatprep.subr.mxu0 0.0
    %52 = vmatpush1.msra.mxu0 0.0
    %53 = vmatprep.subr.mxu0 0.0
    %54 = vmatpush1.msra.mxu0 0.0
    %55 = vmatprep.subr.mxu0 0.0
    %56 = vmatpush1.msra.mxu0 0.0
    %57 = vmatprep.subr.mxu0 0.0
    %58 = vmatpush1.msra.mxu0 0.0
    %59 = vmatprep.subr.mxu0 0.0
    %60 = vmatpush1.msra.mxu0 0.0
    %61 = vmatprep.subr.mxu0 0.0
    %62 = vmatpush1.msra.mxu0 0.0
    %63 = vmatprep.subr.mxu0 0.0
    %64 = vmatpush1.msra.mxu0 0.0
    %65 = vmatprep.subr.mxu0 0.0
    %66 = vmatpush1.msra.mxu0 0.0
    %67 = vmatprep.subr.mxu0 0.0
    %68 = vmatpush1.msra.mxu0 0.0
    %69 = vmatprep.subr.mxu0 0.0
    %70 = vmatpush1.msra.mxu0 0.0
    %71 = vmatprep.subr.mxu0 0.0
    %72 = vmatpush1.msra.mxu0 0.0
    %73 = vmatprep.subr.mxu0 0.0
    %74 = vmatpush1.msra.mxu0 0.0
    %75 = vmatprep.subr.mxu0 0.0
    %76 = vmatpush1.msra.mxu0 0.0
    %77 = vmatprep.subr.mxu0 0.0
    %78 = vmatpush1.msra.mxu0 0.0
    %79 = vmatprep.subr.mxu0 0.0
    %80 = vmatpush1.msra.mxu0 0.0
    %81 = vmatprep.subr.mxu0 0.0
    %82 = vmatpush1.msra.mxu0 0.0
    %83 = vmatprep.subr.mxu0 0.0
    %84 = vmatpush1.msra.mxu0 0.0
    %85 = vmatprep.subr.mxu0 0.0
    %86 = vmatpush1.msra.mxu0 0.0
    %87 = vmatprep.subr.mxu0 0.0
    %88 = vmatpush1.msra.mxu0 0.0
    %89 = vmatprep.subr.mxu0 0.0
    %90 = vmatpush1.msra.mxu0 0.0
    %91 = vmatprep.subr.mxu0 0.0
    %92 = vmatpush1.msra.mxu0 0.0
    %93 = vmatprep.subr.mxu0 0.0
    %94 = vmatpush1.msra.mxu0 0.0
    %95 = vmatprep.subr.mxu0 0.0
    %96 = vmatpush1.msra.mxu0 0.0
    %97 = vmatprep.subr.mxu0 0.0
    %98 = vmatpush1.msra.mxu0 0.0
    %99 = vmatprep.subr.mxu0 0.0
    %100 = vmatpush1.msra.mxu0 0.0
    %101 = vmatprep.mubr.f32.mxu0 0.0
    %102 = vmatmul.mubr.f32.gmra.mrb[0].mxu0 %v26
    %v103 = vpop.f32.mrb[0].mxu0
    %v104 = vadd.f32 %v20, %v103
    %v105 = vpop.f32.mrb[0].mxu0
    %106 = vmatprep.mubr.f32.mxu0 0.0
    %107 = vmatmul.mubr.f32.gmra.mrb[0].mxu0 %v29
    %v108 = vpop.f32.mrb[0].mxu0
    %v109 = vadd.f32 %v21, %v108
    %v110 = vpop.f32.mrb[0].mxu0
    %111 = vmatprep.mubr.f32.mxu0 0.0
    %112 = vmatmul.mubr.f32.gmra.mrb[0].mxu0 %v32
    %v113 = vpop.f32.mrb[0].mxu0
    %v114 = vadd.f32 %v22, %v113
    %v115 = vpop.f32.mrb[0].mxu0
    %116 = vmatprep.mubr.f32.mxu0 0.0
    %117 = vmatmul.mubr.f32.gmra.mrb[0].mxu0 %v35
    %v118 = vpop.f32.mrb[0].mxu0
    %v119 = vadd.f32 %v23, %v118
    %v120 = vpop.f32.mrb[0].mxu0
    %121 = vdwg.mxu0
    %vm122 = vcmask 261120
    %123 = vst.msk [vmem:[#allocation2] sm:$0xff] %vm122, %v104
    %124 = vst.msk [vmem:[#allocation2 + $0x8] sm:$0xff] %vm122, %v109
    %125 = vst.msk [vmem:[#allocation2 + $0x10] sm:$0xff] %vm122, %v114
    %126 = vst.msk [vmem:[#allocation2 + $0x18] sm:$0xff] %vm122, %v119
    // Predicated region
    $region14: #{tpu_custom_call.1} parent=1 // pred_check
      _
    $region15: #{tpu_custom_call.1} parent=1 // pred_check_branch
      %128 = sbr.rel (0) target = $region17
    $region16: #{tpu_custom_call.1} parent=1 // pred_region
      %s130 = ssub.s32 512, 512
      %131 = vsyncadd [#allocation3], %s130
      %s132 = sshll.u32 [#allocation2], 4
      %s133 = int_to_ptr.vmem [resolvable:$true] %s132
      %138 = dma.vmem_to_hbm [thread:$0]  %s133, 512, %s3, [#allocation3], 128, 128, 8
    $region17: #{tpu_custom_call.1} parent=1 // pred_fallthru
      _
    // Predicated region
    $region18: #{tpu_custom_call.1} parent=1 // pred_check
      _
    $region19: #{tpu_custom_call.1} parent=1 // pred_check_branch
      %140 = sbr.rel (0) target = $region21
    $region20: #{tpu_custom_call.1} parent=1 // pred_region
      %141 = dma.done [#allocation3], 512
    $region21: #{tpu_custom_call.1} parent=1 // pred_fallthru
      _
    %142 = vsyncpa [#allocation3], 1

// kernel: tpu_custom_call.1
$region0: #{tpu_custom_call.1}
  #allocation0 [shape = 'u32[]', space=smem, size = 0x4, offset = 0x4, fixed_abs, tag = 'smem constant byte address 0x4 - core index']
  #allocation1 [shape = 'u32[144,128]{1,0:T(1,128)}', space=vmem, size = 0x12000, scoped, tag = 'internal scratch']
  %s0 = inlined_call_operand.vmem [shape: f32[32,8], index: 0, kind: input, shape index: {}]
  %s1 = inlined_call_operand.vmem [shape: f32[8,32], index: 1, kind: input, shape index: {}]
  %s2 = inlined_call_operand.vmem [shape: f32[32,32], index: 2, kind: input, shape index: {}]
  %s3 = inlined_call_operand.hbm [shape: f32[32,32], index: 3, kind: output, shape index: {}]
  %s4 = sld [smem:[#allocation0]]
  $region22: #{tpu_custom_call.1} parent=0
    _
  %s6 = ssub.s32 1, %s4
  %s7 = scalar_select 0, %s6, %s4
  $region1: #{tpu_custom_call.1} parent=0
    #allocation2 [shape = 'u8[16384]{0}', space=vmem, size = 0x4000, scoped, tag = 'output window, operand 0, single buffered']
    #allocation3 [shape = 's32[1]{0}', space=sflag, size = 0x4, scoped, tag = 'scoped memory for tpu_custom_call.1']
    %8 = vsyncpa [#allocation3], 0
    // Predicated region
    $region2: #{tpu_custom_call.1} parent=1 // pred_check
      _
    $region3: #{tpu_custom_call.1} parent=1 // pred_check_branch
      %10 = sbr.rel (0) target = $region5
    $region4: #{tpu_custom_call.1} parent=1 // pred_region
      _
    $region5: #{tpu_custom_call.1} parent=1 // pred_fallthru
      _
    // Predicated region
    $region6: #{tpu_custom_call.1} parent=1 // pred_check
      _
    $region7: #{tpu_custom_call.1} parent=1 // pred_check_branch
      %12 = sbr.rel (0) target = $region9
    $region8: #{tpu_custom_call.1} parent=1 // pred_region
      _
    $region9: #{tpu_custom_call.1} parent=1 // pred_fallthru
      _
    // Predicated region
    $region10: #{tpu_custom_call.1} parent=1 // pred_check
      _
    $region11: #{tpu_custom_call.1} parent=1 // pred_check_branch
      %14 = sbr.rel (0) target = $region13
    $region12: #{tpu_custom_call.1} parent=1 // pred_region
      _
    $region13: #{tpu_custom_call.1} parent=1 // pred_fallthru
      _
    %v15 = vld [vmem:[%s0] sm:$0xff]
    %v16 = vld [vmem:[%s0 + $0x8] sm:$0xff]
    %v17 = vld [vmem:[%s0 + $0x10] sm:$0xff]
    %v18 = vld [vmem:[%s0 + $0x18] sm:$0xff]
    %v19 = vld [vmem:[%s1] sm:$0xff]
    %v20 = vld [vmem:[%s2] sm:$0xff]
    %v21 = vld [vmem:[%s2 + $0x8] sm:$0xff]
    %v22 = vld [vmem:[%s2 + $0x10] sm:$0xff]
    %v23 = vld [vmem:[%s2 + $0x18] sm:$0xff]
    %vm24 = vcmask 64512
    %v26 = vsel %vm24, %v15, 0
    %v29 = vsel %vm24, %v16, 0
    %v32 = vsel %vm24, %v17, 0
    %v35 = vsel %vm24, %v18, 0
    %37 = vmatprep.subr.mxu0 0.0
    %38 = vmatpush1.msra.mxu0 %v19
    %39 = vmatprep.subr.mxu0 0.0
    %40 = vmatpush1.msra.mxu0 0.0
    %41 = vmatprep.subr.mxu0 0.0
    %42 = vmatpush1.msra.mxu0 0.0
    %43 = vmatprep.subr.mxu0 0.0
    %44 = vmatpush1.msra.mxu0 0.0
    %45 = vmatprep.subr.mxu0 0.0
    %46 = vmatpush1.msra.mxu0 0.0
    %47 = vmatprep.subr.mxu0 0.0
    %48 = vmatpush1.msra.mxu0 0.0
    %49 = vmatprep.subr.mxu0 0.0
    %50 = vmatpush1.msra.mxu0 0.0
    %51 = vmatprep.subr.mxu0 0.0
    %52 = vmatpush1.msra.mxu0 0.0
    %53 = vmatprep.subr.mxu0 0.0
    %54 = vmatpush1.msra.mxu0 0.0
    %55 = vmatprep.subr.mxu0 0.0
    %56 = vmatpush1.msra.mxu0 0.0
    %57 = vmatprep.subr.mxu0 0.0
    %58 = vmatpush1.msra.mxu0 0.0
    %59 = vmatprep.subr.mxu0 0.0
    %60 = vmatpush1.msra.mxu0 0.0
    %61 = vmatprep.subr.mxu0 0.0
    %62 = vmatpush1.msra.mxu0 0.0
    %63 = vmatprep.subr.mxu0 0.0
    %64 = vmatpush1.msra.mxu0 0.0
    %65 = vmatprep.subr.mxu0 0.0
    %66 = vmatpush1.msra.mxu0 0.0
    %67 = vmatprep.subr.mxu0 0.0
    %68 = vmatpush1.msra.mxu0 0.0
    %69 = vmatprep.subr.mxu0 0.0
    %70 = vmatpush1.msra.mxu0 0.0
    %71 = vmatprep.subr.mxu0 0.0
    %72 = vmatpush1.msra.mxu0 0.0
    %73 = vmatprep.subr.mxu0 0.0
    %74 = vmatpush1.msra.mxu0 0.0
    %75 = vmatprep.subr.mxu0 0.0
    %76 = vmatpush1.msra.mxu0 0.0
    %77 = vmatprep.subr.mxu0 0.0
    %78 = vmatpush1.msra.mxu0 0.0
    %79 = vmatprep.subr.mxu0 0.0
    %80 = vmatpush1.msra.mxu0 0.0
    %81 = vmatprep.subr.mxu0 0.0
    %82 = vmatpush1.msra.mxu0 0.0
    %83 = vmatprep.subr.mxu0 0.0
    %84 = vmatpush1.msra.mxu0 0.0
    %85 = vmatprep.subr.mxu0 0.0
    %86 = vmatpush1.msra.mxu0 0.0
    %87 = vmatprep.subr.mxu0 0.0
    %88 = vmatpush1.msra.mxu0 0.0
    %89 = vmatprep.subr.mxu0 0.0
    %90 = vmatpush1.msra.mxu0 0.0
    %91 = vmatprep.subr.mxu0 0.0
    %92 = vmatpush1.msra.mxu0 0.0
    %93 = vmatprep.subr.mxu0 0.0
    %94 = vmatpush1.msra.mxu0 0.0
    %95 = vmatprep.subr.mxu0 0.0
    %96 = vmatpush1.msra.mxu0 0.0
    %97 = vmatprep.subr.mxu0 0.0
    %98 = vmatpush1.msra.mxu0 0.0
    %99 = vmatprep.subr.mxu0 0.0
    %100 = vmatpush1.msra.mxu0 0.0
    %101 = vmatprep.mubr.f32.mxu0 0.0
    %102 = vmatmul.mubr.f32.gmra.mrb[0].mxu0 %v26
    %v103 = vpop.f32.mrb[0].mxu0
    %v104 = vadd.f32 %v20, %v103
    %v105 = vpop.f32.mrb[0].mxu0
    %106 = vmatprep.mubr.f32.mxu0 0.0
    %107 = vmatmul.mubr.f32.gmra.mrb[0].mxu0 %v29
    %v108 = vpop.f32.mrb[0].mxu0
    %v109 = vadd.f32 %v21, %v108
    %v110 = vpop.f32.mrb[0].mxu0
    %111 = vmatprep.mubr.f32.mxu0 0.0
    %112 = vmatmul.mubr.f32.gmra.mrb[0].mxu0 %v32
    %v113 = vpop.f32.mrb[0].mxu0
    %v114 = vadd.f32 %v22, %v113
    %v115 = vpop.f32.mrb[0].mxu0
    %116 = vmatprep.mubr.f32.mxu0 0.0
    %117 = vmatmul.mubr.f32.gmra.mrb[0].mxu0 %v35
    %v118 = vpop.f32.mrb[0].mxu0
    %v119 = vadd.f32 %v23, %v118
    %v120 = vpop.f32.mrb[0].mxu0
    %121 = vdwg.mxu0
    %vm122 = vcmask 261120
    %123 = vst.msk [vmem:[#allocation2] sm:$0xff] %vm122, %v104
    %124 = vst.msk [vmem:[#allocation2 + $0x8] sm:$0xff] %vm122, %v109
    %125 = vst.msk [vmem:[#allocation2 + $0x10] sm:$0xff] %vm122, %v114
    %126 = vst.msk [vmem:[#allocation2 + $0x18] sm:$0xff] %vm122, %v119
    // Predicated region
    $region14: #{tpu_custom_call.1} parent=1 // pred_check
      _
    $region15: #{tpu_custom_call.1} parent=1 // pred_check_branch
      %128 = sbr.rel (0) target = $region17
    $region16: #{tpu_custom_call.1} parent=1 // pred_region
      %s130 = ssub.s32 512, 512
      %131 = vsyncadd [#allocation3], %s130
      %s132 = sshll.u32 [#allocation2], 4
      %s133 = int_to_ptr.vmem [resolvable:$true] %s132
      %138 = dma.vmem_to_hbm [thread:$0]  %s133, 512, %s3, [#allocation3], 128, 128, 8
    $region17: #{tpu_custom_call.1} parent=1 // pred_fallthru
      _
    // Predicated region
    $region18: #{tpu_custom_call.1} parent=1 // pred_check
      _
    $region19: #{tpu_custom_call.1} parent=1 // pred_check_branch
      %140 = sbr.rel (0) target = $region21
    $region20: #{tpu_custom_call.1} parent=1 // pred_region
      %141 = dma.done [#allocation3], 512
    $region21: #{tpu_custom_call.1} parent=1 // pred_fallthru
      _
    %142 = vsyncpa [#allocation3], 1

</llo_original>
